<compile_context>
chip_gen: v6e
topology: v6e:2x2x1
jax: 0.10.0
libtpu: 0.0.40
codegen_flags: <defaults>
</compile_context>

<pallas_src>
import functools

import jax
import jax.numpy as jnp
from jax.experimental import pallas as pl
from jax.experimental.pallas import tpu as pltpu

BN_EPS = 1e-5


# ---------------------------------------------------------------------------
# VMEM configuration / tiling
# ---------------------------------------------------------------------------
def _vmem_config():
    """Returns (vmem_limit_bytes, tile_budget_bytes) sized per TPU generation."""
    try:
        cap = int(pltpu.get_tpu_info().vmem_capacity_bytes)
    except Exception:
        cap = 64 * 1024 * 1024  # conservative fallback = v7x per-core VMEM
    limit = min((cap * 3) // 4, 96 * 1024 * 1024)   # ~96 MiB on v5e/v6e, ~48 MiB on v7x
    budget = (limit * 3) // 4                       # ~72 MiB / ~36 MiB tile budget
    return limit, budget


def _pick_hw_tile(hw, per_col_bytes, budget_bytes):
    """Largest lane-dense (multiple-of-128) HW tile fitting the VMEM budget,
    preferring full rows (fully contiguous DMAs) when they fit."""
    max_tl = max(128, budget_bytes // max(per_col_bytes, 1))
    if hw <= max_tl:
        return hw
    return max(128, (min(max_tl, hw) // 128) * 128)


# ---------------------------------------------------------------------------
# Kernels
# ---------------------------------------------------------------------------
def _stats_kernel(x_ref, xsum_ref, gram_ref, *, hw, tl, ragged):
    # x_ref: (1, Cin, TL);  xsum_ref: (1, Cin, 1) f32;  gram_ref: (1, Cin, Cin) f32.
    # Output blocks are indexed by n only, so they stay VMEM-resident while the
    # innermost ("arbitrary") tile axis accumulates into them.
    @pl.when(pl.program_id(1) == 0)
    def _():
        xsum_ref[...] = jnp.zeros_like(xsum_ref)
        gram_ref[...] = jnp.zeros_like(gram_ref)

    x = x_ref[0]                                             # (Cin, TL)
    if ragged:
        t = pl.program_id(1)
        col = jax.lax.broadcasted_iota(jnp.int32, x.shape, 1)
        x = jnp.where(col < (hw - t * tl), x, jnp.zeros_like(x))

    ones = jnp.ones((tl, 1), x.dtype)
    xsum_ref[0] += jnp.dot(x, ones, preferred_element_type=jnp.float32)   # X @ 1
    gram_ref[0] += jax.lax.dot_general(                                   # X @ X^T
        x, x, (((1,), (1,)), ((), ())), preferred_element_type=jnp.float32)


def _apply_kernel(x_ref, w_ref, shift_ref, o_ref):
    # o[n, :, tile] = (scale*W) @ x[n, :, tile] + shift   (scale folded into W upstream,
    # bias cancelled by the BN mean subtraction).
    y = jnp.dot(w_ref[...], x_ref[0], preferred_element_type=jnp.float32)  # (Cout, TL)
    o_ref[0] = (y + shift_ref[...]).astype(o_ref.dtype)


def _fused_kernel(x_ref, w_ref, gamma_ref, beta_ref, o_ref, y_sc, *, m_total):
    # Small-shape path: entire problem resident in VMEM, one HBM read of x.
    def conv_one(n, carry):
        y_sc[n] = jnp.dot(w_ref[...], x_ref[n], preferred_element_type=jnp.float32)
        return carry

    jax.lax.fori_loop(0, x_ref.shape[0], conv_one, 0)

    y = y_sc[...]                                                        # (N, Cout, HW) f32
    mean = jnp.sum(jnp.sum(y, axis=2, keepdims=True), axis=0, keepdims=True) / m_total
    d = y - mean
    var = jnp.sum(jnp.sum(d * d, axis=2, keepdims=True), axis=0, keepdims=True) / m_total
    inv_std = jax.lax.rsqrt(var + BN_EPS)
    o_ref[...] = (d * (inv_std * gamma_ref[...]) + beta_ref[...]).astype(o_ref.dtype)


# ---------------------------------------------------------------------------
# Wrapper
# ---------------------------------------------------------------------------
def shortcut2d_forward(x_nchw, conv_w, conv_b, bn_gamma, bn_beta,
                       *, allow_fused=True, max_hw_tile=None):
    """ShortCut2D forward: 1x1 Conv2d (padding='same') + BatchNorm2d (training stats).

    x_nchw: (N, Cin, H, W); conv_w: (Cout, Cin, 1, 1); conv_b/bn_gamma/bn_beta: (Cout,).
    conv_b is accepted for API parity but unused: with training-mode BatchNorm the conv
    bias is exactly cancelled by the mean subtraction.
    """
    del conv_b
    N, Cin, H, W = x_nchw.shape
    Cout = conv_w.shape[0]
    HW = H * W
    M = N * HW
    isz = jnp.dtype(x_nchw.dtype).itemsize

    x3 = x_nchw.reshape(N, Cin, HW)                       # free reshape, no transpose
    w32 = conv_w.reshape(Cout, Cin).astype(jnp.float32)

    vmem_limit, budget = _vmem_config()

    # ---- small-shape fast path: one launch, one HBM read of x -----------------------
    fused_bytes = N * HW * (Cin * isz + Cout * isz + 2 * Cout * 4)
    if allow_fused and fused_bytes <= min(budget, 16 * 1024 * 1024):
        out3 = pl.pallas_call(
            functools.partial(_fused_kernel, m_total=float(M)),
            out_shape=jax.ShapeDtypeStruct((N, Cout, HW), x3.dtype),
            scratch_shapes=[pltpu.VMEM((N, Cout, HW), jnp.float32)],
            compiler_params=pltpu.CompilerParams(vmem_limit_bytes=vmem_limit),
        )(x3, w32.astype(x3.dtype),
          bn_gamma.astype(jnp.float32).reshape(Cout, 1),
          bn_beta.astype(jnp.float32).reshape(Cout, 1))
        return out3.reshape(N, Cout, H, W)

    # ---- pass 1: Gram-matrix stats of x (DMA-bound, per-image partials) -------------
    tl1 = _pick_hw_tile(HW, 3 * Cin * isz + 16, budget)   # x double-buffered + mask temp
    if max_hw_tile is not None:
        tl1 = min(tl1, max_hw_tile)
    t1 = pl.cdiv(HW, tl1)
    ragged1 = (HW % tl1) != 0

    xsum_p, gram_p = pl.pallas_call(
        functools.partial(_stats_kernel, hw=HW, tl=tl1, ragged=ragged1),
        out_shape=(jax.ShapeDtypeStruct((N, Cin, 1), jnp.float32),
                   jax.ShapeDtypeStruct((N, Cin, Cin), jnp.float32)),
        grid_spec=pltpu.PrefetchScalarGridSpec(
            num_scalar_prefetch=0,
            grid=(N, t1),
            in_specs=[pl.BlockSpec((1, Cin, tl1), lambda n, t: (n, 0, t))],
            out_specs=(pl.BlockSpec((1, Cin, 1), lambda n, t: (n, 0, 0)),
                       pl.BlockSpec((1, Cin, Cin), lambda n, t: (n, 0, 0)))),
        compiler_params=pltpu.CompilerParams(
            dimension_semantics=("parallel", "arbitrary"),
            vmem_limit_bytes=vmem_limit),
    )(x3)

    # ---- fold: derive y stats and the BN affine (tiny Cin/Cout-sized XLA math) ------
    x_sum = jnp.sum(xsum_p[:, :, 0], axis=0)                     # (Cin,)
    gram = jnp.sum(gram_p, axis=0)                               # (Cin, Cin)
    y_sum = w32 @ x_sum                                          # (Cout,)
    y_sumsq = jnp.sum((w32 @ gram) * w32, axis=1)                # diag(W G W^T)
    mean = y_sum / M
    var = jnp.maximum(y_sumsq / M - mean * mean, 0.0)
    inv_std = jax.lax.rsqrt(var + BN_EPS)
    scale = bn_gamma.astype(jnp.float32) * inv_std               # (Cout,)
    shift = bn_beta.astype(jnp.float32) - mean * scale           # (Cout,)
    w_s = (scale[:, None] * w32).astype(x3.dtype)                # fold scale into W

    # ---- pass 2: matmul with folded BN affine, lane-dense output tiles --------------
    per_col2 = 2 * Cin * isz + 3 * Cout * isz + 4 * Cout + 16    # x, out (dbl-buf) + f32 y
    tl2 = _pick_hw_tile(HW, per_col2, budget)
    if max_hw_tile is not None:
        tl2 = min(tl2, max_hw_tile)
    t2 = pl.cdiv(HW, tl2)

    out3 = pl.pallas_call(
        _apply_kernel,
        out_shape=jax.ShapeDtypeStruct((N, Cout, HW), x3.dtype),
        grid_spec=pltpu.PrefetchScalarGridSpec(
            num_scalar_prefetch=0,
            grid=(N, t2),
            in_specs=[pl.BlockSpec((1, Cin, tl2), lambda n, t: (n, 0, t)),
                      pl.BlockSpec((Cout, Cin), lambda n, t: (0, 0)),
                      pl.BlockSpec((Cout, 1), lambda n, t: (0, 0))],
            out_specs=pl.BlockSpec((1, Cout, tl2), lambda n, t: (n, 0, t))),
        compiler_params=pltpu.CompilerParams(
            dimension_semantics=("parallel", "parallel"),
            vmem_limit_bytes=vmem_limit),
    )(x3, w_s, shift.reshape(Cout, 1))

    return out3.reshape(N, Cout, H, W)


# ---------------------------------------------------------------------------
# Pure-JAX reference (PyTorch Conv2d(1x1) + BatchNorm2d in training mode)
# ---------------------------------------------------------------------------
def reference_forward(x_nchw, conv_w, conv_b, bn_gamma, bn_beta):
    Cout, Cin = conv_w.shape[0], conv_w.shape[1]
    w = conv_w.reshape(Cout, Cin)
    y = jnp.einsum("nchw,oc->nohw", x_nchw, w) + conv_b[None, :, None, None]
    mean = jnp.mean(y, axis=(0, 2, 3), keepdims=True)
    var = jnp.mean((y - mean) ** 2, axis=(0, 2, 3), keepdims=True)
    yhat = (y - mean) / jnp.sqrt(var + BN_EPS)
    return yhat * bn_gamma[None, :, None, None] + bn_beta[None, :, None, None]


if __name__ == "__main__":
    key = jax.random.PRNGKey(0)
    k_x, k_w, k_b, k_x2 = jax.random.split(key, 4)

    N, Cin, Cout, H, W = 2, 4, 8, 16, 16
    x = jax.random.normal(k_x, (N, Cin, H, W), dtype=jnp.float32)

    # Deterministic parameter init (shapes from nn.Conv2d / nn.BatchNorm2d __init__).
    fan_in = Cin * 1 * 1
    bound = 1.0 / (fan_in ** 0.5)
    conv_w = jax.random.uniform(k_w, (Cout, Cin, 1, 1), minval=-bound, maxval=bound)
    conv_b = jax.random.uniform(k_b, (Cout,), minval=-bound, maxval=bound)
    bn_gamma = jnp.ones((Cout,), jnp.float32)   # BatchNorm2d default init
    bn_beta = jnp.zeros((Cout,), jnp.float32)

    ref = reference_forward(x, conv_w, conv_b, bn_gamma, bn_beta)

    # 1) small-shape fused fast path (one launch, one HBM read of x).
    out = jax.block_until_ready(shortcut2d_forward(x, conv_w, conv_b, bn_gamma, bn_beta))
    assert out.shape == (N, Cout, H, W)
    assert jnp.allclose(out, ref, atol=1e-3, rtol=1e-3), float(jnp.max(jnp.abs(out - ref)))

    # 2) two-pass streaming path (Gram stats + folded affine), same shape.
    out2 = jax.block_until_ready(
        shortcut2d_forward(x, conv_w, conv_b, bn_gamma, bn_beta, allow_fused=False))
    assert jnp.allclose(out2, ref, atol=1e-3, rtol=1e-3), float(jnp.max(jnp.abs(out2 - ref)))

    # 3) ragged-HW path: HW=400 with forced 128-wide tiles -> masked last stats tile.
    H2 = W2 = 20
    x_r = jax.random.normal(k_x2, (N, Cin, H2, W2), dtype=jnp.float32)
    ref3 = reference_forward(x_r, conv_w, conv_b, bn_gamma, bn_beta)
    out3 = jax.block_until_ready(
        shortcut2d_forward(x_r, conv_w, conv_b, bn_gamma, bn_beta,
                           allow_fused=False, max_hw_tile=128))
    assert jnp.allclose(out3, ref3, atol=1e-3, rtol=1e-3), float(jnp.max(jnp.abs(out3 - ref3)))

    print("KERNEL_OK")
</pallas_src>

<mosaic_0001>
module attributes {stable_mosaic.version = 11 : i64} {
  func.func @_fused_kernel(%arg0: memref<2x4x256xf32, #tpu.memory_space<vmem>>, %arg1: memref<8x4xf32, #tpu.memory_space<vmem>>, %arg2: memref<8x1xf32, #tpu.memory_space<vmem>>, %arg3: memref<8x1xf32, #tpu.memory_space<vmem>>, %arg4: memref<2x8x256xf32, #tpu.memory_space<vmem>>, %arg5: memref<2x8x256xf32, #tpu.memory_space<vmem>>) attributes {dimension_semantics = [], scalar_prefetch = 0 : i64, scratch_operands = 1 : i64, tpu.core_type = #tpu.core_type<tc>} {
    %c0_i32 = arith.constant 0 : i32
    %c2_i32 = arith.constant 2 : i32
    %0 = arith.addi %c0_i32, %c2_i32 : i32
    %c1_i32 = arith.constant 1 : i32
    scf.for %arg6 = %c0_i32 to %0 step %c1_i32  : i32 {
      %c0_16 = arith.constant 0 : index
      %c0_17 = arith.constant 0 : index
      %30 = vector.load %arg1[%c0_16, %c0_17] : memref<8x4xf32, #tpu.memory_space<vmem>>, vector<8x4xf32>
      %31 = arith.index_cast %arg6 : i32 to index
      %c0_18 = arith.constant 0 : index
      %c0_19 = arith.constant 0 : index
      %32 = vector.load %arg0[%31, %c0_18, %c0_19] : memref<2x4x256xf32, #tpu.memory_space<vmem>>, vector<1x4x256xf32>
      %33 = vector.shape_cast %32 : vector<1x4x256xf32> to vector<4x256xf32>
      %cst_20 = arith.constant dense<0.000000e+00> : vector<8x256xf32>
      %34 = tpu.matmul %30, %33, %cst_20 {dimension_numbers = #tpu.dot_dimension_numbers<[1], [0], [0], [1], [0, 0, 1, 1], [], []>} : vector<8x4xf32>, vector<4x256xf32>, vector<8x256xf32> -> vector<8x256xf32>
      %35 = arith.index_cast %arg6 : i32 to index
      %c0_21 = arith.constant 0 : index
      %c0_22 = arith.constant 0 : index
      %36 = vector.load %arg5[%35, %c0_21, %c0_22] : memref<2x8x256xf32, #tpu.memory_space<vmem>>, vector<1x8x256xf32>
      %37 = vector.shape_cast %36 : vector<1x8x256xf32> to vector<8x256xf32>
      %38 = vector.shape_cast %34 : vector<8x256xf32> to vector<1x8x256xf32>
      tpu.vector_store %arg5[%35, %c0_21, %c0_22], %38 {strides = array<i32>} : memref<2x8x256xf32, #tpu.memory_space<vmem>>, vector<1x8x256xf32>,
    }
    %c2_i32_0 = arith.constant 2 : i32
    %c0 = arith.constant 0 : index
    %c0_1 = arith.constant 0 : index
    %c0_2 = arith.constant 0 : index
    %1 = vector.load %arg5[%c0, %c0_1, %c0_2] : memref<2x8x256xf32, #tpu.memory_space<vmem>>, vector<2x8x256xf32>
    %cst = arith.constant dense<0.000000e+00> : vector<2x8xf32>
    %2 = vector.multi_reduction <add>, %1, %cst [2] : vector<2x8x256xf32> to vector<2x8xf32>
    %3 = vector.shape_cast %2 : vector<2x8xf32> to vector<2x8x1xf32>
    %cst_3 = arith.constant dense<0.000000e+00> : vector<8x1xf32>
    %4 = vector.multi_reduction <add>, %3, %cst_3 [0] : vector<2x8x1xf32> to vector<8x1xf32>
    %5 = vector.shape_cast %4 : vector<8x1xf32> to vector<1x8x1xf32>
    %cst_4 = arith.constant 5.120000e+02 : f32
    %6 = vector.broadcast %cst_4 : f32 to vector<1x8x1xf32>
    %7 = arith.divf %5, %6 : vector<1x8x1xf32>
    %8 = vector.broadcast %7 : vector<1x8x1xf32> to vector<2x8x256xf32>
    %9 = arith.subf %1, %8 : vector<2x8x256xf32>
    %10 = arith.mulf %9, %9 : vector<2x8x256xf32>
    %cst_5 = arith.constant dense<0.000000e+00> : vector<2x8xf32>
    %11 = vector.multi_reduction <add>, %10, %cst_5 [2] : vector<2x8x256xf32> to vector<2x8xf32>
    %12 = vector.shape_cast %11 : vector<2x8xf32> to vector<2x8x1xf32>
    %cst_6 = arith.constant dense<0.000000e+00> : vector<8x1xf32>
    %13 = vector.multi_reduction <add>, %12, %cst_6 [0] : vector<2x8x1xf32> to vector<8x1xf32>
    %14 = vector.shape_cast %13 : vector<8x1xf32> to vector<1x8x1xf32>
    %cst_7 = arith.constant 5.120000e+02 : f32
    %15 = vector.broadcast %cst_7 : f32 to vector<1x8x1xf32>
    %16 = arith.divf %14, %15 : vector<1x8x1xf32>
    %cst_8 = arith.constant 9.99999974E-6 : f32
    %17 = vector.broadcast %cst_8 : f32 to vector<1x8x1xf32>
    %18 = arith.addf %16, %17 : vector<1x8x1xf32>
    %19 = math.rsqrt %18 : vector<1x8x1xf32>
    %c0_9 = arith.constant 0 : index
    %c0_10 = arith.constant 0 : index
    %20 = vector.load %arg2[%c0_9, %c0_10] : memref<8x1xf32, #tpu.memory_space<vmem>>, vector<8x1xf32>
    %21 = vector.shape_cast %20 : vector<8x1xf32> to vector<1x8x1xf32>
    %22 = arith.mulf %19, %21 : vector<1x8x1xf32>
    %23 = vector.broadcast %22 : vector<1x8x1xf32> to vector<2x8x256xf32>
    %24 = arith.mulf %9, %23 : vector<2x8x256xf32>
    %c0_11 = arith.constant 0 : index
    %c0_12 = arith.constant 0 : index
    %25 = vector.load %arg3[%c0_11, %c0_12] : memref<8x1xf32, #tpu.memory_space<vmem>>, vector<8x1xf32>
    %26 = vector.shape_cast %25 : vector<8x1xf32> to vector<1x8x1xf32>
    %27 = vector.broadcast %26 : vector<1x8x1xf32> to vector<2x8x256xf32>
    %28 = arith.addf %24, %27 : vector<2x8x256xf32>
    %c0_13 = arith.constant 0 : index
    %c0_14 = arith.constant 0 : index
    %c0_15 = arith.constant 0 : index
    %29 = vector.load %arg4[%c0_13, %c0_14, %c0_15] : memref<2x8x256xf32, #tpu.memory_space<vmem>>, vector<2x8x256xf32>
    tpu.vector_store %arg4[%c0_13, %c0_14, %c0_15], %28 {strides = array<i32>} : memref<2x8x256xf32, #tpu.memory_space<vmem>>, vector<2x8x256xf32>,
    return
  }
}

</mosaic_0001>

<llo_original>
// kernel: tpu_custom_call.1
$region0: #{tpu_custom_call.1}
  #allocation0 [shape = 'u32[]', space=smem, size = 0x4, offset = 0x4, fixed_abs, tag = 'smem constant byte address 0x4 - core index']
  #allocation1 [shape = 'u32[144,128]{1,0:T(1,128)}', space=vmem, size = 0x12000, scoped, tag = 'internal scratch']
  #allocation2 [shape = 'f32[2,8,256]{2,1,0:T(8,128)}', space=vmem, size = 0x4000, scoped, tag = 'scratch operand']
  %s0 = inlined_call_operand.vmem [shape: f32[2,4,256], index: 0, kind: input, shape index: {}]
  %s1 = inlined_call_operand.vmem [shape: f32[8,4], index: 1, kind: input, shape index: {}]
  %s2 = inlined_call_operand.vmem [shape: f32[8,1], index: 2, kind: input, shape index: {}]
  %s3 = inlined_call_operand.vmem [shape: f32[8,1], index: 3, kind: input, shape index: {}]
  %s4 = inlined_call_operand.hbm [shape: f32[2,8,256], index: 4, kind: output, shape index: {}]
  %s5 = sld [smem:[#allocation0]]
  $region33: #{tpu_custom_call.1} parent=0
    _
  %s7 = ssub.s32 1, %s5
  %s8 = scalar_select 0, %s7, %s5
  $region1: #{tpu_custom_call.1} parent=0
    #allocation3 [shape = 'u8[16384]{0}', space=vmem, size = 0x4000, scoped, tag = 'output window, operand 0, single buffered']
    #allocation4 [shape = 's32[1]{0}', space=sflag, size = 0x4, scoped, tag = 'scoped memory for tpu_custom_call.1']
    %9 = vsyncpa [#allocation4], 0
    // Predicated region
    $region2: #{tpu_custom_call.1} parent=1 // pred_check
      _
    $region3: #{tpu_custom_call.1} parent=1 // pred_check_branch
      %11 = sbr.rel (0) target = $region5
    $region4: #{tpu_custom_call.1} parent=1 // pred_region
      _
    $region5: #{tpu_custom_call.1} parent=1 // pred_fallthru
      _
    // Predicated region
    $region6: #{tpu_custom_call.1} parent=1 // pred_check
      _
    $region7: #{tpu_custom_call.1} parent=1 // pred_check_branch
      %13 = sbr.rel (0) target = $region9
    $region8: #{tpu_custom_call.1} parent=1 // pred_region
      _
    $region9: #{tpu_custom_call.1} parent=1 // pred_fallthru
      _
    // Predicated region
    $region10: #{tpu_custom_call.1} parent=1 // pred_check
      _
    $region11: #{tpu_custom_call.1} parent=1 // pred_check_branch
      %15 = sbr.rel (0) target = $region13
    $region12: #{tpu_custom_call.1} parent=1 // pred_region
      _
    $region13: #{tpu_custom_call.1} parent=1 // pred_fallthru
      _
    // Predicated region
    $region14: #{tpu_custom_call.1} parent=1 // pred_check
      _
    $region15: #{tpu_custom_call.1} parent=1 // pred_check_branch
      %17 = sbr.rel (0) target = $region17
    $region16: #{tpu_custom_call.1} parent=1 // pred_region
      _
    $region17: #{tpu_custom_call.1} parent=1 // pred_fallthru
      _
    loop: start=0, step=1, limit=2
    $region18: #{tpu_custom_call.1} parent=1 // loop_pre_header
      _
    $region19: #{tpu_custom_call.1} parent=1 // loop_header
      %s19 = sphi 0, %s23
      %p20 = scmp.ge.s32.totalorder %s19, 2
    $region20: #{tpu_custom_call.1} parent=1 // loop_header_branch
      %22 = sbr.rel (%p20) target = $region24
    $region21: #{tpu_custom_call.1} parent=1 // loop_body
      %v24 = vld [vmem:[%s1] sm:$0xff]
      %s25 = smul.u32 %s19, 2
      %s26 = smul.addr %s25, 4
      %s27 = scalar_lea.vmem %s0, %s26
      %v28 = vld [vmem:[%s27] sm:$0xff]
      %v30 = vcombine.high %v28, %v28
      %vm31 = vcmask 31744
      %v33 = vsel %vm31, %v24, 0
      %vm35 = vcmask 1043456
      %v36 = vsel %vm35, %v28, 0
      %v38 = vsel %vm35, %v30, 0
      %40 = vmatprep.subr.mxu0 0.0
      %41 = vmatpush1.msra.mxu0 0.0
      %42 = vmatprep.subr.mxu0 0.0
      %43 = vmatpush1.msra.mxu0 0.0
      %44 = vmatprep.subr.mxu0 0.0
      %45 = vmatpush1.msra.mxu0 0.0
      %46 = vmatprep.subr.mxu0 0.0
      %47 = vmatpush1.msra.mxu0 0.0
      %48 = vmatprep.subr.mxu0 0.0
      %49 = vmatpush1.msra.mxu0 0.0
      %50 = vmatprep.subr.mxu0 0.0
      %51 = vmatpush1.msra.mxu0 0.0
      %52 = vmatprep.subr.mxu0 0.0
      %53 = vmatpush1.msra.mxu0 0.0
      %54 = vmatprep.subr.mxu0 0.0
      %55 = vmatpush1.msra.mxu0 0.0
      %56 = vmatprep.subr.mxu0 0.0
      %57 = vmatpush1.msra.mxu0 0.0
      %58 = vmatprep.subr.mxu0 0.0
      %59 = vmatpush1.msra.mxu0 0.0
      %60 = vmatprep.subr.mxu0 0.0
      %61 = vmatpush1.msra.mxu0 0.0
      %62 = vmatprep.subr.mxu0 0.0
      %63 = vmatpush1.msra.mxu0 0.0
      %64 = vmatprep.subr.mxu0 0.0
      %65 = vmatpush1.msra.mxu0 0.0
      %66 = vmatprep.subr.mxu0 0.0
      %67 = vmatpush1.msra.mxu0 0.0
      %68 = vmatprep.subr.mxu0 0.0
      %69 = vmatpush1.msra.mxu0 0.0
      %70 = vmatprep.subr.mxu0 %v38
      %71 = vmatpush1.msra.mxu0 %v36
      %72 = vmatprep.subr.mxu0 0.0
      %73 = vmatpush2.msra.mxu0 0.0
      %74 = vmatprep.subr.mxu0 0.0
      %75 = vmatpush2.msra.mxu0 0.0
      %76 = vmatprep.subr.mxu0 0.0
      %77 = vmatpush2.msra.mxu0 0.0
      %78 = vmatprep.subr.mxu0 0.0
      %79 = vmatpush2.msra.mxu0 0.0
      %80 = vmatprep.subr.mxu0 0.0
      %81 = vmatpush2.msra.mxu0 0.0
      %82 = vmatprep.subr.mxu0 0.0
      %83 = vmatpush2.msra.mxu0 0.0
      %84 = vmatprep.subr.mxu0 0.0
      %85 = vmatpush2.msra.mxu0 0.0
      %86 = vmatprep.subr.mxu0 0.0
      %87 = vmatpush2.msra.mxu0 0.0
      %88 = vmatprep.subr.mxu0 0.0
      %89 = vmatpush2.msra.mxu0 0.0
      %90 = vmatprep.subr.mxu0 0.0
      %91 = vmatpush2.msra.mxu0 0.0
      %92 = vmatprep.subr.mxu0 0.0
      %93 = vmatpush2.msra.mxu0 0.0
      %94 = vmatprep.subr.mxu0 0.0
      %95 = vmatpush2.msra.mxu0 0.0
      %96 = vmatprep.subr.mxu0 0.0
      %97 = vmatpush2.msra.mxu0 0.0
      %98 = vmatprep.subr.mxu0 0.0
      %99 = vmatpush2.msra.mxu0 0.0
      %100 = vmatprep.subr.mxu0 0.0
      %101 = vmatpush2.msra.mxu0 0.0
      %102 = vmatprep.subr.mxu0 0.0
      %103 = vmatpush2.msra.mxu0 0.0
      %104 = vmatprep.mubr.f32.mxu0 0.0
      %105 = vmatmul.mubr.f32.gmra.mxu0 %v33
      %v106 = vpop.f32.mrf.mxu0
      %v107 = vadd.f32 0.0, %v106
      %v108 = vpop.f32.mrf.mxu0
      %v109 = vadd.f32 0.0, %v108
      %110 = vdwg.mxu0
      %s111 = smul.addr %s25, 8
      %s112 = scalar_lea.vmem [#allocation2], %s111
      %113 = vst [vmem:[%s112] sm:$0xff] %v107
      %114 = vst [vmem:[%s112 + $0x8] sm:$0xff] %v109
    $region22: #{tpu_custom_call.1} parent=1 // loop_footer
      %s23 = sadd.s32 1, %s19
    $region23: #{tpu_custom_call.1} parent=1 // loop_footer_branch
      %18 = sbr.rel target = $region19
    $region24: #{tpu_custom_call.1} parent=1 // loop_exit
      _
    %v115 = vld [vmem:[#allocation2] sm:$0xff]
    %v116 = vld [vmem:[#allocation2 + $0x8] sm:$0xff]
    %v117 = vld [vmem:[#allocation2 + $0x10] sm:$0xff]
    %v118 = vld [vmem:[#allocation2 + $0x18] sm:$0xff]
    %v119 = vadd.f32 %v115, %v116
    %120 = vadd.xlane.f32.xlu0 %v119
    %v121 = vpop.xlane.xlu0 %120
    %v122 = vadd.f32 %v117, %v118
    %123 = vadd.xlane.f32.xlu0 %v122
    %v124 = vpop.xlane.xlu0 %123
    %v125 = vadd.f32 %v121, %v124
    %v126 = vrcp.pop 512.0
    %v127 = vmul.f32 %v125, %v126
    %v128 = vsub.f32 %v115, %v127
    %v129 = vsub.f32 %v116, %v127
    %v130 = vsub.f32 %v117, %v127
    %v131 = vsub.f32 %v118, %v127
    %v132 = vmul.f32 %v128, %v128
    %v133 = vmul.f32 %v129, %v129
    %v134 = vmul.f32 %v130, %v130
    %v135 = vmul.f32 %v131, %v131
    %v136 = vadd.f32 %v132, %v133
    %137 = vadd.xlane.f32.xlu0 %v136
    %v138 = vpop.xlane.xlu0 %137
    %v139 = vadd.f32 %v134, %v135
    %140 = vadd.xlane.f32.xlu0 %v139
    %v141 = vpop.xlane.xlu0 %140
    %v142 = vadd.f32 %v138, %v141
    %v143 = vmul.f32 %v142, %v126
    %v144 = vadd.f32 %v143, 1e-05
    %v145 = vrsqrt.pop %v144
    %v146 = vld [vmem:[%s2] sm:$0xff]
    %v147 = vmul.f32 %v145, %v146
    %149 = vset.pattern.permute.xlu0 0
    %150 = vperm.xlu0 %149, %v147
    %v151 = vpop.permute.xlu0 %150
    %v153 = vmul.f32 %v128, %v151
    %v154 = vmul.f32 %v129, %v151
    %v155 = vmul.f32 %v130, %v151
    %v156 = vmul.f32 %v131, %v151
    %v157 = vld [vmem:[%s3] sm:$0xff]
    %159 = vset.pattern.permute.xlu0 0
    %160 = vperm.xlu0 %159, %v157
    %v161 = vpop.permute.xlu0 %160
    %v163 = vadd.f32 %v153, %v161
    %v164 = vadd.f32 %v154, %v161
    %v165 = vadd.f32 %v155, %v161
    %v166 = vadd.f32 %v156, %v161
    %167 = vst [vmem:[#allocation3] sm:$0xff] %v163
    %168 = vst [vmem:[#allocation3 + $0x8] sm:$0xff] %v164
    %169 = vst [vmem:[#allocation3 + $0x10] sm:$0xff] %v165
    %170 = vst [vmem:[#allocation3 + $0x18] sm:$0xff] %v166
    // Predicated region
    $region25: #{tpu_custom_call.1} parent=1 // pred_check
      _
    $region26: #{tpu_custom_call.1} parent=1 // pred_check_branch
      %172 = sbr.rel (0) target = $region28
    $region27: #{tpu_custom_call.1} parent=1 // pred_region
      %s174 = ssub.s32 512, 512
      %175 = vsyncadd [#allocation4], %s174
      %s176 = sshll.u32 [#allocation3], 4
      %s177 = int_to_ptr.vmem [resolvable:$true] %s176
      %182 = dma.vmem_to_hbm [thread:$0]  %s177, 512, %s4, [#allocation4], 256, 256, 16
    $region28: #{tpu_custom_call.1} parent=1 // pred_fallthru
      _
    // Predicated region
    $region29: #{tpu_custom_call.1} parent=1 // pred_check
      _
    $region30: #{tpu_custom_call.1} parent=1 // pred_check_branch
      %184 = sbr.rel (0) target = $region32
    $region31: #{tpu_custom_call.1} parent=1 // pred_region
      %185 = dma.done [#allocation4], 512
    $region32: #{tpu_custom_call.1} parent=1 // pred_fallthru
      _
    %186 = vsyncpa [#allocation4], 1

</llo_original>
